<compile_context>
chip_gen: v7x
topology: tpu7x:2x2x1
jax: 0.10.0
libtpu: 0.0.40
codegen_flags: <defaults>
</compile_context>

<pallas_src>
import functools

import jax
import jax.numpy as jnp
from jax.experimental import pallas as pl
from jax.experimental.pallas import tpu as pltpu

_LANE = 128


def _round_up(x, m):
    return (x + m - 1) // m * m


def _align_kernel(x_ref, w_ref, b_ref, loss_ref, *, a_pad, batch, inv_temp):
    """Fused 3-way projection + L2-normalize + symmetric contrastive CE loss."""
    # ---- single fused projection matmul: bf16 operands, f32 accumulation ----
    x = x_ref[...].astype(jnp.bfloat16)              # (B, D_total)
    w = w_ref[...]                                   # (3*a_pad, D_total) bf16 block-diag
    a_all = jax.lax.dot_general(
        x, w, dimension_numbers=(((1,), (1,)), ((), ())),   # x @ w.T, transpose-free
        preferred_element_type=jnp.float32)          # (B, 3*a_pad) f32
    a_all = a_all + b_ref[...]                       # f32 bias; padded lanes stay 0

    # ---- per-modality L2 normalize (f32), folding sqrt(1/T) into the scale ----
    sqrt_inv_t = inv_temp ** 0.5
    embs = []
    for m in range(3):
        a = a_all[:, m * a_pad:(m + 1) * a_pad]      # static, 128-lane-aligned slice
        ss = jnp.sum(a * a, axis=-1, keepdims=True)  # (B, 1)
        # 1/max(||a||, 1e-12) == rsqrt(max(ss, 1e-24)); EUP rsqrt, f32.
        scale = jax.lax.rsqrt(jnp.maximum(ss, 1e-24)) * sqrt_inv_t
        embs.append(a * scale)
    av, at, aa = embs

    def pair_loss(a, b):
        # sim[i,j] = <a_i, b_j>; the 1/T factor is already folded into a and b.
        sim = jax.lax.dot_general(
            a, b, dimension_numbers=(((1,), (1,)), ((), ())),
            preferred_element_type=jnp.float32)      # (B, B)
        diag_sum = jnp.sum(a * b)                    # == trace(sim), no iota/mask
        # Row (lane-axis) logsumexp.
        m_r = jnp.max(sim, axis=1, keepdims=True)
        lse_r = m_r + jnp.log(jnp.sum(jnp.exp(sim - m_r), axis=1, keepdims=True))
        # Column logsumexp on the same matrix (sublane/XLU reduction — free at
        # small B; avoids a second MXU matmul for sim.T).
        m_c = jnp.max(sim, axis=0, keepdims=True)
        lse_c = m_c + jnp.log(jnp.sum(jnp.exp(sim - m_c), axis=0, keepdims=True))
        return (jnp.sum(lse_r) + jnp.sum(lse_c) - 2.0 * diag_sum) * (0.5 / batch)

    loss_ref[0, 0] = pair_loss(av, at) + pair_loss(av, aa) + pair_loss(at, aa)


def pack_align_params(wv, bv, wt, bt, wa, ba):
    """Pack three PyTorch-layout (A, D_m) linears into one block-diagonal weight.

    Returns (w_blk, b_all, a_pad):
      w_blk: (3*a_pad, D_total) bf16, row block m holds wm in rows [m*a_pad, m*a_pad+A)
             and columns [off_m, off_m+D_m); everything else is zero.
      b_all: (1, 3*a_pad) f32 packed biases (zeros in padded lanes).
    Precompute once if the weights are reused across steps.
    """
    A = wv.shape[0]
    a_pad = _round_up(A, _LANE)
    d_total = wv.shape[1] + wt.shape[1] + wa.shape[1]
    w_blk = jnp.zeros((3 * a_pad, d_total), jnp.float32)
    b_all = jnp.zeros((1, 3 * a_pad), jnp.float32)
    off = 0
    for m, (w, b) in enumerate(((wv, bv), (wt, bt), (wa, ba))):
        d = w.shape[1]
        w_blk = w_blk.at[m * a_pad:m * a_pad + A, off:off + d].set(
            w.astype(jnp.float32))
        b_all = b_all.at[0, m * a_pad:m * a_pad + A].set(b.astype(jnp.float32))
        off += d
    return w_blk.astype(jnp.bfloat16), b_all, a_pad


def multimodal_align_loss_packed(vis, txt, aud, w_blk, b_all, a_pad,
                                 temperature=0.1):
    batch = vis.shape[0]
    x_cat = jnp.concatenate([vis, txt, aud], axis=1)          # (B, D_total)
    d_total = x_cat.shape[1]
    n_out = w_blk.shape[0]                                     # 3 * a_pad

    flops = 2 * batch * d_total * n_out + 3 * 2 * batch * batch * a_pad
    transcendentals = 6 * batch * batch + 6 * batch + 3 * batch
    bytes_accessed = int(x_cat.size * x_cat.dtype.itemsize
                         + w_blk.size * w_blk.dtype.itemsize
                         + b_all.size * b_all.dtype.itemsize + 4)

    kernel = functools.partial(_align_kernel, a_pad=a_pad, batch=batch,
                               inv_temp=1.0 / float(temperature))
    out = pl.pallas_call(
        kernel,
        out_shape=jax.ShapeDtypeStruct((1, 1), jnp.float32),
        in_specs=[pl.BlockSpec(memory_space=pltpu.VMEM)] * 3,
        out_specs=pl.BlockSpec(memory_space=pltpu.SMEM),
        cost_estimate=pl.CostEstimate(flops=flops,
                                      transcendentals=transcendentals,
                                      bytes_accessed=bytes_accessed),
    )(x_cat, w_blk, b_all)
    return out[0, 0]


def multimodal_align_loss(visual_embedded, text_embedded, audio_embedded,
                          wv, bv, wt, bt, wa, ba, temperature=0.1):
    """Pallas implementation of MultimodalAlignNet.forward.

    visual/text/audio_embedded: (B, D_v) / (B, D_t) / (B, D_a)
    wv/wt/wa: PyTorch nn.Linear layout (aligned_dim, in_dim); bv/bt/ba: (aligned_dim,)
    Returns scalar f32 loss = loss_vtc + loss_vac + loss_tac.
    """
    w_blk, b_all, a_pad = pack_align_params(wv, bv, wt, bt, wa, ba)
    return multimodal_align_loss_packed(visual_embedded, text_embedded,
                                        audio_embedded, w_blk, b_all, a_pad,
                                        temperature)


def _ref_loss(vis, txt, aud, wv, bv, wt, bt, wa, ba, temperature=0.1,
              matmul_dtype=jnp.float32):
    """Pure-JAX reference mirroring the PyTorch forward.

    matmul_dtype=bf16 gives a precision-matched reference for the kernel's
    bf16-operand MXU projection; f32 mirrors the PyTorch f32 forward.
    """
    def proj_norm(x, w, b):
        a = jax.lax.dot_general(
            x.astype(matmul_dtype), w.astype(matmul_dtype),
            dimension_numbers=(((1,), (1,)), ((), ())),
            preferred_element_type=jnp.float32) + b
        return a / jnp.maximum(jnp.linalg.norm(a, axis=-1, keepdims=True), 1e-12)

    def sym_ce(a, b):
        sim = a @ b.T / temperature
        labels = jnp.arange(sim.shape[0])
        diag = sim[labels, labels]
        lse_r = jax.nn.logsumexp(sim, axis=1)
        lse_c = jax.nn.logsumexp(sim, axis=0)
        return 0.5 * (jnp.mean(lse_r - diag) + jnp.mean(lse_c - diag))

    av = proj_norm(vis, wv, bv)
    at = proj_norm(txt, wt, bt)
    aa = proj_norm(aud, wa, ba)
    return sym_ce(av, at) + sym_ce(av, aa) + sym_ce(at, aa)


if __name__ == "__main__":
    # Small, module-consistent shapes.
    B = 8
    visual_feature_dim = 32
    text_feature_dim = 48
    audio_feature_dim = 40
    aligned_dim = 64
    temperature = 0.1

    key = jax.random.PRNGKey(0)
    (k_vis, k_txt, k_aud,
     k_wv, k_bv, k_wt, k_bt, k_wa, k_ba) = jax.random.split(key, 9)

    visual_embedded = jax.random.normal(k_vis, (B, visual_feature_dim), jnp.float32)
    text_embedded = jax.random.normal(k_txt, (B, text_feature_dim), jnp.float32)
    audio_embedded = jax.random.normal(k_aud, (B, audio_feature_dim), jnp.float32)

    def linear_init(kw, kb, out_dim, in_dim):
        bound = 1.0 / in_dim ** 0.5
        w = jax.random.uniform(kw, (out_dim, in_dim), jnp.float32, -bound, bound)
        b = jax.random.uniform(kb, (out_dim,), jnp.float32, -bound, bound)
        return w, b

    wv, bv = linear_init(k_wv, k_bv, aligned_dim, visual_feature_dim)
    wt, bt = linear_init(k_wt, k_bt, aligned_dim, text_feature_dim)
    wa, ba = linear_init(k_wa, k_ba, aligned_dim, audio_feature_dim)

    loss = multimodal_align_loss(visual_embedded, text_embedded, audio_embedded,
                                 wv, bv, wt, bt, wa, ba, temperature)
    loss = jax.block_until_ready(loss)

    # Precision-matched reference (bf16 MXU operands, like the kernel feed).
    ref_bf16 = _ref_loss(visual_embedded, text_embedded, audio_embedded,
                         wv, bv, wt, bt, wa, ba, temperature,
                         matmul_dtype=jnp.bfloat16)
    # Full-f32 reference mirroring the PyTorch forward (looser tol: bf16 MXU feed).
    ref_f32 = _ref_loss(visual_embedded, text_embedded, audio_embedded,
                        wv, bv, wt, bt, wa, ba, temperature,
                        matmul_dtype=jnp.float32)

    assert jnp.allclose(loss, ref_bf16, atol=5e-3, rtol=5e-3), (loss, ref_bf16)
    assert jnp.allclose(loss, ref_f32, atol=3e-2, rtol=3e-2), (loss, ref_f32)

    print("KERNEL_OK")
</pallas_src>

<mosaic_0001>
module attributes {stable_mosaic.version = 11 : i64} {
  func.func @_align_kernel(%arg0: memref<8x120xf32, #tpu.memory_space<vmem>>, %arg1: memref<384x120xbf16, #tpu.memory_space<vmem>>, %arg2: memref<1x384xf32, #tpu.memory_space<vmem>>, %arg3: memref<1x1xf32, #tpu.memory_space<smem>>) attributes {dimension_semantics = [], scalar_prefetch = 0 : i64, scratch_operands = 0 : i64, tpu.core_type = #tpu.core_type<tc>} {
    %c0 = arith.constant 0 : index
    %c0_0 = arith.constant 0 : index
    %0 = vector.load %arg0[%c0, %c0_0] : memref<8x120xf32, #tpu.memory_space<vmem>>, vector<8x120xf32>
    %1 = arith.truncf %0 : vector<8x120xf32> to vector<8x120xbf16>
    %c0_1 = arith.constant 0 : index
    %c0_2 = arith.constant 0 : index
    %2 = vector.load %arg1[%c0_1, %c0_2] : memref<384x120xbf16, #tpu.memory_space<vmem>>, vector<384x120xbf16>
    %cst = arith.constant dense<0.000000e+00> : vector<8x384xf32>
    %3 = tpu.matmul %1, %2, %cst {dimension_numbers = #tpu.dot_dimension_numbers<[1], [1], [0], [0], [0, 0, 1, 0], [], []>} : vector<8x120xbf16>, vector<384x120xbf16>, vector<8x384xf32> -> vector<8x384xf32>
    %c0_3 = arith.constant 0 : index
    %c0_4 = arith.constant 0 : index
    %4 = vector.load %arg2[%c0_3, %c0_4] : memref<1x384xf32, #tpu.memory_space<vmem>>, vector<1x384xf32>
    %5 = vector.broadcast %4 : vector<1x384xf32> to vector<8x384xf32>
    %6 = arith.addf %3, %5 : vector<8x384xf32>
    %7 = vector.extract_strided_slice %6 {offsets = [0, 0], sizes = [8, 128], strides = [1, 1]} : vector<8x384xf32> to vector<8x128xf32>
    %8 = arith.mulf %7, %7 : vector<8x128xf32>
    %cst_5 = arith.constant dense<0.000000e+00> : vector<8xf32>
    %9 = vector.multi_reduction <add>, %8, %cst_5 [1] : vector<8x128xf32> to vector<8xf32>
    %10 = vector.shape_cast %9 : vector<8xf32> to vector<8x1xf32>
    %cst_6 = arith.constant 1.000000e-24 : f32
    %11 = vector.broadcast %cst_6 : f32 to vector<8x1xf32>
    %12 = arith.maximumf %10, %11 : vector<8x1xf32>
    %13 = math.rsqrt %12 : vector<8x1xf32>
    %cst_7 = arith.constant 3.1622777 : f32
    %14 = vector.broadcast %cst_7 : f32 to vector<8x1xf32>
    %15 = arith.mulf %13, %14 : vector<8x1xf32>
    %16 = vector.broadcast %15 : vector<8x1xf32> to vector<8x128xf32>
    %17 = arith.mulf %7, %16 : vector<8x128xf32>
    %18 = vector.extract_strided_slice %6 {offsets = [0, 128], sizes = [8, 128], strides = [1, 1]} : vector<8x384xf32> to vector<8x128xf32>
    %19 = arith.mulf %18, %18 : vector<8x128xf32>
    %cst_8 = arith.constant dense<0.000000e+00> : vector<8xf32>
    %20 = vector.multi_reduction <add>, %19, %cst_8 [1] : vector<8x128xf32> to vector<8xf32>
    %21 = vector.shape_cast %20 : vector<8xf32> to vector<8x1xf32>
    %cst_9 = arith.constant 1.000000e-24 : f32
    %22 = vector.broadcast %cst_9 : f32 to vector<8x1xf32>
    %23 = arith.maximumf %21, %22 : vector<8x1xf32>
    %24 = math.rsqrt %23 : vector<8x1xf32>
    %cst_10 = arith.constant 3.1622777 : f32
    %25 = vector.broadcast %cst_10 : f32 to vector<8x1xf32>
    %26 = arith.mulf %24, %25 : vector<8x1xf32>
    %27 = vector.broadcast %26 : vector<8x1xf32> to vector<8x128xf32>
    %28 = arith.mulf %18, %27 : vector<8x128xf32>
    %29 = vector.extract_strided_slice %6 {offsets = [0, 256], sizes = [8, 128], strides = [1, 1]} : vector<8x384xf32> to vector<8x128xf32>
    %30 = arith.mulf %29, %29 : vector<8x128xf32>
    %cst_11 = arith.constant dense<0.000000e+00> : vector<8xf32>
    %31 = vector.multi_reduction <add>, %30, %cst_11 [1] : vector<8x128xf32> to vector<8xf32>
    %32 = vector.shape_cast %31 : vector<8xf32> to vector<8x1xf32>
    %cst_12 = arith.constant 1.000000e-24 : f32
    %33 = vector.broadcast %cst_12 : f32 to vector<8x1xf32>
    %34 = arith.maximumf %32, %33 : vector<8x1xf32>
    %35 = math.rsqrt %34 : vector<8x1xf32>
    %cst_13 = arith.constant 3.1622777 : f32
    %36 = vector.broadcast %cst_13 : f32 to vector<8x1xf32>
    %37 = arith.mulf %35, %36 : vector<8x1xf32>
    %38 = vector.broadcast %37 : vector<8x1xf32> to vector<8x128xf32>
    %39 = arith.mulf %29, %38 : vector<8x128xf32>
    %cst_14 = arith.constant dense<0.000000e+00> : vector<8x8xf32>
    %40 = tpu.matmul %17, %28, %cst_14 {dimension_numbers = #tpu.dot_dimension_numbers<[1], [1], [0], [0], [0, 0, 1, 0], [], []>} : vector<8x128xf32>, vector<8x128xf32>, vector<8x8xf32> -> vector<8x8xf32>
    %41 = arith.mulf %17, %28 : vector<8x128xf32>
    %42 = vector.shape_cast %41 : vector<8x128xf32> to vector<1x8x128xf32>
    %cst_15 = arith.constant dense<0.000000e+00> : vector<1xf32>
    %43 = vector.multi_reduction <add>, %42, %cst_15 [1, 2] : vector<1x8x128xf32> to vector<1xf32>
    %44 = vector.shape_cast %43 : vector<1xf32> to vector<1x1x1xf32>
    %45 = vector.extract %44[0, 0, 0] : f32 from vector<1x1x1xf32>
    %cst_16 = arith.constant dense<0xFF800000> : vector<8xf32>
    %46 = vector.multi_reduction <maximumf>, %40, %cst_16 [1] : vector<8x8xf32> to vector<8xf32>
    %47 = vector.shape_cast %46 : vector<8xf32> to vector<8x1xf32>
    %48 = vector.broadcast %47 : vector<8x1xf32> to vector<8x8xf32>
    %49 = arith.subf %40, %48 : vector<8x8xf32>
    %50 = math.exp %49 : vector<8x8xf32>
    %cst_17 = arith.constant dense<0.000000e+00> : vector<8xf32>
    %51 = vector.multi_reduction <add>, %50, %cst_17 [1] : vector<8x8xf32> to vector<8xf32>
    %52 = vector.shape_cast %51 : vector<8xf32> to vector<8x1xf32>
    %53 = math.log %52 : vector<8x1xf32>
    %54 = arith.addf %47, %53 : vector<8x1xf32>
    %cst_18 = arith.constant dense<0xFF800000> : vector<8xf32>
    %55 = vector.multi_reduction <maximumf>, %40, %cst_18 [0] : vector<8x8xf32> to vector<8xf32>
    %56 = vector.shape_cast %55 : vector<8xf32> to vector<1x8xf32>
    %57 = vector.broadcast %56 : vector<1x8xf32> to vector<8x8xf32>
    %58 = arith.subf %40, %57 : vector<8x8xf32>
    %59 = math.exp %58 : vector<8x8xf32>
    %cst_19 = arith.constant dense<0.000000e+00> : vector<8xf32>
    %60 = vector.multi_reduction <add>, %59, %cst_19 [0] : vector<8x8xf32> to vector<8xf32>
    %61 = vector.shape_cast %60 : vector<8xf32> to vector<1x8xf32>
    %62 = math.log %61 : vector<1x8xf32>
    %63 = arith.addf %56, %62 : vector<1x8xf32>
    %64 = vector.shape_cast %54 : vector<8x1xf32> to vector<1x8x1xf32>
    %cst_20 = arith.constant dense<0.000000e+00> : vector<1xf32>
    %65 = vector.multi_reduction <add>, %64, %cst_20 [1, 2] : vector<1x8x1xf32> to vector<1xf32>
    %66 = vector.shape_cast %65 : vector<1xf32> to vector<1x1x1xf32>
    %67 = vector.extract %66[0, 0, 0] : f32 from vector<1x1x1xf32>
    %68 = vector.shape_cast %63 : vector<1x8xf32> to vector<1x1x8xf32>
    %cst_21 = arith.constant dense<0.000000e+00> : vector<1xf32>
    %69 = vector.multi_reduction <add>, %68, %cst_21 [1, 2] : vector<1x1x8xf32> to vector<1xf32>
    %70 = vector.shape_cast %69 : vector<1xf32> to vector<1x1x1xf32>
    %71 = vector.extract %70[0, 0, 0] : f32 from vector<1x1x1xf32>
    %72 = arith.addf %67, %71 : f32
    %cst_22 = arith.constant 2.000000e+00 : f32
    %73 = arith.mulf %cst_22, %45 : f32
    %74 = arith.subf %72, %73 : f32
    %cst_23 = arith.constant 6.250000e-02 : f32
    %75 = arith.mulf %74, %cst_23 : f32
    %cst_24 = arith.constant dense<0.000000e+00> : vector<8x8xf32>
    %76 = tpu.matmul %17, %39, %cst_24 {dimension_numbers = #tpu.dot_dimension_numbers<[1], [1], [0], [0], [0, 0, 1, 0], [], []>} : vector<8x128xf32>, vector<8x128xf32>, vector<8x8xf32> -> vector<8x8xf32>
    %77 = arith.mulf %17, %39 : vector<8x128xf32>
    %78 = vector.shape_cast %77 : vector<8x128xf32> to vector<1x8x128xf32>
    %cst_25 = arith.constant dense<0.000000e+00> : vector<1xf32>
    %79 = vector.multi_reduction <add>, %78, %cst_25 [1, 2] : vector<1x8x128xf32> to vector<1xf32>
    %80 = vector.shape_cast %79 : vector<1xf32> to vector<1x1x1xf32>
    %81 = vector.extract %80[0, 0, 0] : f32 from vector<1x1x1xf32>
    %cst_26 = arith.constant dense<0xFF800000> : vector<8xf32>
    %82 = vector.multi_reduction <maximumf>, %76, %cst_26 [1] : vector<8x8xf32> to vector<8xf32>
    %83 = vector.shape_cast %82 : vector<8xf32> to vector<8x1xf32>
    %84 = vector.broadcast %83 : vector<8x1xf32> to vector<8x8xf32>
    %85 = arith.subf %76, %84 : vector<8x8xf32>
    %86 = math.exp %85 : vector<8x8xf32>
    %cst_27 = arith.constant dense<0.000000e+00> : vector<8xf32>
    %87 = vector.multi_reduction <add>, %86, %cst_27 [1] : vector<8x8xf32> to vector<8xf32>
    %88 = vector.shape_cast %87 : vector<8xf32> to vector<8x1xf32>
    %89 = math.log %88 : vector<8x1xf32>
    %90 = arith.addf %83, %89 : vector<8x1xf32>
    %cst_28 = arith.constant dense<0xFF800000> : vector<8xf32>
    %91 = vector.multi_reduction <maximumf>, %76, %cst_28 [0] : vector<8x8xf32> to vector<8xf32>
    %92 = vector.shape_cast %91 : vector<8xf32> to vector<1x8xf32>
    %93 = vector.broadcast %92 : vector<1x8xf32> to vector<8x8xf32>
    %94 = arith.subf %76, %93 : vector<8x8xf32>
    %95 = math.exp %94 : vector<8x8xf32>
    %cst_29 = arith.constant dense<0.000000e+00> : vector<8xf32>
    %96 = vector.multi_reduction <add>, %95, %cst_29 [0] : vector<8x8xf32> to vector<8xf32>
    %97 = vector.shape_cast %96 : vector<8xf32> to vector<1x8xf32>
    %98 = math.log %97 : vector<1x8xf32>
    %99 = arith.addf %92, %98 : vector<1x8xf32>
    %100 = vector.shape_cast %90 : vector<8x1xf32> to vector<1x8x1xf32>
    %cst_30 = arith.constant dense<0.000000e+00> : vector<1xf32>
    %101 = vector.multi_reduction <add>, %100, %cst_30 [1, 2] : vector<1x8x1xf32> to vector<1xf32>
    %102 = vector.shape_cast %101 : vector<1xf32> to vector<1x1x1xf32>
    %103 = vector.extract %102[0, 0, 0] : f32 from vector<1x1x1xf32>
    %104 = vector.shape_cast %99 : vector<1x8xf32> to vector<1x1x8xf32>
    %cst_31 = arith.constant dense<0.000000e+00> : vector<1xf32>
    %105 = vector.multi_reduction <add>, %104, %cst_31 [1, 2] : vector<1x1x8xf32> to vector<1xf32>
    %106 = vector.shape_cast %105 : vector<1xf32> to vector<1x1x1xf32>
    %107 = vector.extract %106[0, 0, 0] : f32 from vector<1x1x1xf32>
    %108 = arith.addf %103, %107 : f32
    %cst_32 = arith.constant 2.000000e+00 : f32
    %109 = arith.mulf %cst_32, %81 : f32
    %110 = arith.subf %108, %109 : f32
    %cst_33 = arith.constant 6.250000e-02 : f32
    %111 = arith.mulf %110, %cst_33 : f32
    %112 = arith.addf %75, %111 : f32
    %cst_34 = arith.constant dense<0.000000e+00> : vector<8x8xf32>
    %113 = tpu.matmul %28, %39, %cst_34 {dimension_numbers = #tpu.dot_dimension_numbers<[1], [1], [0], [0], [0, 0, 1, 0], [], []>} : vector<8x128xf32>, vector<8x128xf32>, vector<8x8xf32> -> vector<8x8xf32>
    %114 = arith.mulf %28, %39 : vector<8x128xf32>
    %115 = vector.shape_cast %114 : vector<8x128xf32> to vector<1x8x128xf32>
    %cst_35 = arith.constant dense<0.000000e+00> : vector<1xf32>
    %116 = vector.multi_reduction <add>, %115, %cst_35 [1, 2] : vector<1x8x128xf32> to vector<1xf32>
    %117 = vector.shape_cast %116 : vector<1xf32> to vector<1x1x1xf32>
    %118 = vector.extract %117[0, 0, 0] : f32 from vector<1x1x1xf32>
    %cst_36 = arith.constant dense<0xFF800000> : vector<8xf32>
    %119 = vector.multi_reduction <maximumf>, %113, %cst_36 [1] : vector<8x8xf32> to vector<8xf32>
    %120 = vector.shape_cast %119 : vector<8xf32> to vector<8x1xf32>
    %121 = vector.broadcast %120 : vector<8x1xf32> to vector<8x8xf32>
    %122 = arith.subf %113, %121 : vector<8x8xf32>
    %123 = math.exp %122 : vector<8x8xf32>
    %cst_37 = arith.constant dense<0.000000e+00> : vector<8xf32>
    %124 = vector.multi_reduction <add>, %123, %cst_37 [1] : vector<8x8xf32> to vector<8xf32>
    %125 = vector.shape_cast %124 : vector<8xf32> to vector<8x1xf32>
    %126 = math.log %125 : vector<8x1xf32>
    %127 = arith.addf %120, %126 : vector<8x1xf32>
    %cst_38 = arith.constant dense<0xFF800000> : vector<8xf32>
    %128 = vector.multi_reduction <maximumf>, %113, %cst_38 [0] : vector<8x8xf32> to vector<8xf32>
    %129 = vector.shape_cast %128 : vector<8xf32> to vector<1x8xf32>
    %130 = vector.broadcast %129 : vector<1x8xf32> to vector<8x8xf32>
    %131 = arith.subf %113, %130 : vector<8x8xf32>
    %132 = math.exp %131 : vector<8x8xf32>
    %cst_39 = arith.constant dense<0.000000e+00> : vector<8xf32>
    %133 = vector.multi_reduction <add>, %132, %cst_39 [0] : vector<8x8xf32> to vector<8xf32>
    %134 = vector.shape_cast %133 : vector<8xf32> to vector<1x8xf32>
    %135 = math.log %134 : vector<1x8xf32>
    %136 = arith.addf %129, %135 : vector<1x8xf32>
    %137 = vector.shape_cast %127 : vector<8x1xf32> to vector<1x8x1xf32>
    %cst_40 = arith.constant dense<0.000000e+00> : vector<1xf32>
    %138 = vector.multi_reduction <add>, %137, %cst_40 [1, 2] : vector<1x8x1xf32> to vector<1xf32>
    %139 = vector.shape_cast %138 : vector<1xf32> to vector<1x1x1xf32>
    %140 = vector.extract %139[0, 0, 0] : f32 from vector<1x1x1xf32>
    %141 = vector.shape_cast %136 : vector<1x8xf32> to vector<1x1x8xf32>
    %cst_41 = arith.constant dense<0.000000e+00> : vector<1xf32>
    %142 = vector.multi_reduction <add>, %141, %cst_41 [1, 2] : vector<1x1x8xf32> to vector<1xf32>
    %143 = vector.shape_cast %142 : vector<1xf32> to vector<1x1x1xf32>
    %144 = vector.extract %143[0, 0, 0] : f32 from vector<1x1x1xf32>
    %145 = arith.addf %140, %144 : f32
    %cst_42 = arith.constant 2.000000e+00 : f32
    %146 = arith.mulf %cst_42, %118 : f32
    %147 = arith.subf %145, %146 : f32
    %cst_43 = arith.constant 6.250000e-02 : f32
    %148 = arith.mulf %147, %cst_43 : f32
    %149 = arith.addf %112, %148 : f32
    %c0_44 = arith.constant 0 : index
    %c0_45 = arith.constant 0 : index
    %150 = memref.load %arg3[%c0_44, %c0_45] : memref<1x1xf32, #tpu.memory_space<smem>>
    memref.store %149, %arg3[%c0_44, %c0_45] : memref<1x1xf32, #tpu.memory_space<smem>>
    return
  }
}

</mosaic_0001>

<llo_original>
// kernel: tpu_custom_call.1
$region0: #{tpu_custom_call.1}
  #allocation0 [shape = 'u32[]', space=smem, size = 0x4, offset = 0x4, fixed_abs, tag = 'smem constant byte address 0x4 - core index']
  #allocation1 [shape = 'u32[144,128]{1,0:T(1,128)}', space=vmem, size = 0x12000, scoped, tag = 'internal scratch']
  %s0 = inlined_call_operand.vmem [shape: f32[8,120], index: 0, kind: input, shape index: {}]
  %s1 = inlined_call_operand.vmem [shape: bf16[384,120], index: 1, kind: input, shape index: {}]
  %s2 = inlined_call_operand.vmem [shape: f32[1,384], index: 2, kind: input, shape index: {}]
  %s3 = inlined_call_operand.hbm [shape: f32[1,1], index: 3, kind: output, shape index: {}]
  %s4 = sld [smem:[#allocation0]]
  $region22: #{tpu_custom_call.1} parent=0
    _
  %s6 = ssub.s32 1, %s4
  %s7 = scalar_select 0, %s6, %s4
  $region1: #{tpu_custom_call.1} parent=0
    #allocation2 [shape = 'u8[512]{0}', space=smem, size = 0x200, scoped, tag = 'output window, operand 0, single buffered']
    #allocation3 [shape = 's32[1]{0}', space=sflag, size = 0x4, scoped, tag = 'scoped memory for tpu_custom_call.1']
    %8 = vsyncpa [#allocation3], 0
    // Predicated region
    $region2: #{tpu_custom_call.1} parent=1 // pred_check
      _
    $region3: #{tpu_custom_call.1} parent=1 // pred_check_branch
      %10 = sbr.rel (0) target = $region5
    $region4: #{tpu_custom_call.1} parent=1 // pred_region
      _
    $region5: #{tpu_custom_call.1} parent=1 // pred_fallthru
      _
    // Predicated region
    $region6: #{tpu_custom_call.1} parent=1 // pred_check
      _
    $region7: #{tpu_custom_call.1} parent=1 // pred_check_branch
      %12 = sbr.rel (0) target = $region9
    $region8: #{tpu_custom_call.1} parent=1 // pred_region
      _
    $region9: #{tpu_custom_call.1} parent=1 // pred_fallthru
      _
    // Predicated region
    $region10: #{tpu_custom_call.1} parent=1 // pred_check
      _
    $region11: #{tpu_custom_call.1} parent=1 // pred_check_branch
      %14 = sbr.rel (0) target = $region13
    $region12: #{tpu_custom_call.1} parent=1 // pred_region
      _
    $region13: #{tpu_custom_call.1} parent=1 // pred_fallthru
      _
    %v16 = vld [vmem:[%s0] sm:$0xff]
    %v17 = vpack.c.bf16 %v16, %v16
    %v18 = vld [vmem:[%s1] sm:$0xf]
    %v19 = vld [vmem:[%s1 + $0x4] sm:$0xf]
    %v20 = vld [vmem:[%s1 + $0x8] sm:$0xf]
    %v21 = vld [vmem:[%s1 + $0xc] sm:$0xf]
    %v22 = vld [vmem:[%s1 + $0x10] sm:$0xf]
    %v23 = vld [vmem:[%s1 + $0x14] sm:$0xf]
    %v24 = vld [vmem:[%s1 + $0x18] sm:$0xf]
    %v25 = vld [vmem:[%s1 + $0x1c] sm:$0xf]
    %v26 = vld [vmem:[%s1 + $0x20] sm:$0xf]
    %v27 = vld [vmem:[%s1 + $0x24] sm:$0xf]
    %v28 = vld [vmem:[%s1 + $0x28] sm:$0xf]
    %v29 = vld [vmem:[%s1 + $0x2c] sm:$0xf]
    %v30 = vld [vmem:[%s1 + $0x30] sm:$0xf]
    %v31 = vld [vmem:[%s1 + $0x34] sm:$0xf]
    %v32 = vld [vmem:[%s1 + $0x38] sm:$0xf]
    %v33 = vld [vmem:[%s1 + $0x3c] sm:$0xf]
    %v34 = vld [vmem:[%s1 + $0x40] sm:$0xf]
    %v35 = vld [vmem:[%s1 + $0x44] sm:$0xf]
    %v36 = vld [vmem:[%s1 + $0x48] sm:$0xf]
    %v37 = vld [vmem:[%s1 + $0x4c] sm:$0xf]
    %v38 = vld [vmem:[%s1 + $0x50] sm:$0xf]
    %v39 = vld [vmem:[%s1 + $0x54] sm:$0xf]
    %v40 = vld [vmem:[%s1 + $0x58] sm:$0xf]
    %v41 = vld [vmem:[%s1 + $0x5c] sm:$0xf]
    %v42 = vld [vmem:[%s1 + $0x60] sm:$0xf]
    %v43 = vld [vmem:[%s1 + $0x64] sm:$0xf]
    %v44 = vld [vmem:[%s1 + $0x68] sm:$0xf]
    %v45 = vld [vmem:[%s1 + $0x6c] sm:$0xf]
    %v46 = vld [vmem:[%s1 + $0x70] sm:$0xf]
    %v47 = vld [vmem:[%s1 + $0x74] sm:$0xf]
    %v48 = vld [vmem:[%s1 + $0x78] sm:$0xf]
    %v49 = vld [vmem:[%s1 + $0x7c] sm:$0xf]
    %v50 = vld [vmem:[%s1 + $0x80] sm:$0xf]
    %v51 = vld [vmem:[%s1 + $0x84] sm:$0xf]
    %v52 = vld [vmem:[%s1 + $0x88] sm:$0xf]
    %v53 = vld [vmem:[%s1 + $0x8c] sm:$0xf]
    %v54 = vld [vmem:[%s1 + $0x90] sm:$0xf]
    %v55 = vld [vmem:[%s1 + $0x94] sm:$0xf]
    %v56 = vld [vmem:[%s1 + $0x98] sm:$0xf]
    %v57 = vld [vmem:[%s1 + $0x9c] sm:$0xf]
    %v58 = vld [vmem:[%s1 + $0xa0] sm:$0xf]
    %v59 = vld [vmem:[%s1 + $0xa4] sm:$0xf]
    %v60 = vld [vmem:[%s1 + $0xa8] sm:$0xf]
    %v61 = vld [vmem:[%s1 + $0xac] sm:$0xf]
    %v62 = vld [vmem:[%s1 + $0xb0] sm:$0xf]
    %v63 = vld [vmem:[%s1 + $0xb4] sm:$0xf]
    %v64 = vld [vmem:[%s1 + $0xb8] sm:$0xf]
    %v65 = vld [vmem:[%s1 + $0xbc] sm:$0xf]
    %v66 = vld [vmem:[%s2] sm:$0x7]
    %v68 = vlaneseq
    %v69 = vshrl.u32 %v68, 7
    %v70 = vsub.s32 0, %v69
    %v71 = vrot.slane %v66, %v70
    %v72 = vlaneseq
    %v73 = vshrl.u32 %v72, 7
    %v74 = vsub.s32 1, %v73
    %v75 = vrot.slane %v66, %v74
    %v76 = vlaneseq
    %v77 = vshrl.u32 %v76, 7
    %v78 = vsub.s32 2, %v77
    %v79 = vrot.slane %v66, %v78
    %v131 = vunpack.c.l.b16 %v18
    %v132 = vunpack.c.l.b16 %v19
    %v133 = vunpack.c.l.b16 %v20
    %v134 = vunpack.c.l.b16 %v21
    %v135 = vunpack.c.l.b16 %v22
    %v136 = vunpack.c.l.b16 %v23
    %v137 = vunpack.c.l.b16 %v24
    %v138 = vunpack.c.l.b16 %v25
    %v139 = vunpack.c.l.b16 %v26
    %v140 = vunpack.c.l.b16 %v27
    %v141 = vunpack.c.l.b16 %v28
    %v142 = vunpack.c.l.b16 %v29
    %v143 = vunpack.c.l.b16 %v30
    %v144 = vunpack.c.l.b16 %v31
    %v145 = vunpack.c.l.b16 %v32
    %v146 = vunpack.c.l.b16 %v33
    %v147 = vunpack.c.l.b16 %v34
    %v148 = vunpack.c.l.b16 %v35
    %v149 = vunpack.c.l.b16 %v36
    %v150 = vunpack.c.l.b16 %v37
    %v151 = vunpack.c.l.b16 %v38
    %v152 = vunpack.c.l.b16 %v39
    %v153 = vunpack.c.l.b16 %v40
    %v154 = vunpack.c.l.b16 %v41
    %v155 = vunpack.c.l.b16 %v42
    %v156 = vunpack.c.l.b16 %v43
    %v157 = vunpack.c.l.b16 %v44
    %v158 = vunpack.c.l.b16 %v45
    %v159 = vunpack.c.l.b16 %v46
    %v160 = vunpack.c.l.b16 %v47
    %v161 = vunpack.c.l.b16 %v48
    %v162 = vunpack.c.l.b16 %v49
    %v163 = vunpack.c.l.b16 %v50
    %v164 = vunpack.c.l.b16 %v51
    %v165 = vunpack.c.l.b16 %v52
    %v166 = vunpack.c.l.b16 %v53
    %v167 = vunpack.c.l.b16 %v54
    %v168 = vunpack.c.l.b16 %v55
    %v169 = vunpack.c.l.b16 %v56
    %v170 = vunpack.c.l.b16 %v57
    %v171 = vunpack.c.l.b16 %v58
    %v172 = vunpack.c.l.b16 %v59
    %v173 = vunpack.c.l.b16 %v60
    %v174 = vunpack.c.l.b16 %v61
    %v175 = vunpack.c.l.b16 %v62
    %v176 = vunpack.c.l.b16 %v63
    %v177 = vunpack.c.l.b16 %v64
    %v178 = vunpack.c.l.b16 %v65
    %v179 = vpack.c.b16 %v132, %v131
    %v180 = vpack.c.b16 %v134, %v133
    %v181 = vpack.c.b16 %v136, %v135
    %v182 = vpack.c.b16 %v138, %v137
    %v183 = vpack.c.b16 %v140, %v139
    %v184 = vpack.c.b16 %v142, %v141
    %v185 = vpack.c.b16 %v144, %v143
    %v186 = vpack.c.b16 %v146, %v145
    %v187 = vpack.c.b16 %v148, %v147
    %v188 = vpack.c.b16 %v150, %v149
    %v189 = vpack.c.b16 %v152, %v151
    %v190 = vpack.c.b16 %v154, %v153
    %v191 = vpack.c.b16 %v156, %v155
    %v192 = vpack.c.b16 %v158, %v157
    %v193 = vpack.c.b16 %v160, %v159
    %v194 = vpack.c.b16 %v162, %v161
    %v195 = vpack.c.b16 %v164, %v163
    %v196 = vpack.c.b16 %v166, %v165
    %v197 = vpack.c.b16 %v168, %v167
    %v198 = vpack.c.b16 %v170, %v169
    %v199 = vpack.c.b16 %v172, %v171
    %v200 = vpack.c.b16 %v174, %v173
    %v201 = vpack.c.b16 %v176, %v175
    %v202 = vpack.c.b16 %v178, %v177
    %vm203 = vcmask 982016
    %v205 = vsel %vm203, %v17, 0
    %v208 = vsel %vm203, %v179, 0
    %v211 = vsel %vm203, %v180, 0
    %v214 = vsel %vm203, %v181, 0
    %v217 = vsel %vm203, %v182, 0
    %v220 = vsel %vm203, %v183, 0
    %v223 = vsel %vm203, %v184, 0
    %v226 = vsel %vm203, %v185, 0
    %v229 = vsel %vm203, %v186, 0
    %v232 = vsel %vm203, %v187, 0
    %v235 = vsel %vm203, %v188, 0
    %v238 = vsel %vm203, %v189, 0
    %v241 = vsel %vm203, %v190, 0
    %v244 = vsel %vm203, %v191, 0
    %v247 = vsel %vm203, %v192, 0
    %v250 = vsel %vm203, %v193, 0
    %v253 = vsel %vm203, %v194, 0
    %v256 = vsel %vm203, %v195, 0
    %v259 = vsel %vm203, %v196, 0
    %v262 = vsel %vm203, %v197, 0
    %v265 = vsel %vm203, %v198, 0
    %v268 = vsel %vm203, %v199, 0
    %v271 = vsel %vm203, %v200, 0
    %v274 = vsel %vm203, %v201, 0
    %v277 = vsel %vm203, %v202, 0
    %279 = vmatprep.subr.bf16.mxu0 0
    %280 = vmatpush1.bf16.xpose.msra.mxu0 %v208
    %281 = vmatprep.subr.bf16.mxu0 0
    %282 = vmatpush1.bf16.xpose.msra.mxu0 %v211
    %283 = vmatprep.subr.bf16.mxu0 0
    %284 = vmatpush1.bf16.xpose.msra.mxu0 %v214
    %285 = vmatprep.subr.bf16.mxu0 0
    %286 = vmatpush1.bf16.xpose.msra.mxu0 %v217
    %287 = vmatprep.subr.bf16.mxu0 0
    %288 = vmatpush1.bf16.xpose.msra.mxu0 %v220
    %289 = vmatprep.subr.bf16.mxu0 0
    %290 = vmatpush1.bf16.xpose.msra.mxu0 %v223
    %291 = vmatprep.subr.bf16.mxu0 0
    %292 = vmatpush1.bf16.xpose.msra.mxu0 %v226
    %293 = vmatprep.subr.bf16.mxu0 0
    %294 = vmatpush1.bf16.xpose.msra.mxu0 %v229
    %295 = vmatprep.subr.bf16.mxu0 0
    %296 = vmatpush1.bf16.xpose.msra.mxu0 %v232
    %297 = vmatprep.subr.bf16.mxu0 0
    %298 = vmatpush1.bf16.xpose.msra.mxu0 %v235
    %299 = vmatprep.subr.bf16.mxu0 0
    %300 = vmatpush1.bf16.xpose.msra.mxu0 %v238
    %301 = vmatprep.subr.bf16.mxu0 0
    %302 = vmatpush1.bf16.xpose.msra.mxu0 %v241
    %303 = vmatprep.subr.bf16.mxu0 0
    %304 = vmatpush1.bf16.xpose.msra.mxu0 %v244
    %305 = vmatprep.subr.bf16.mxu0 0
    %306 = vmatpush1.bf16.xpose.msra.mxu0 %v247
    %307 = vmatprep.subr.bf16.mxu0 0
    %308 = vmatpush1.bf16.xpose.msra.mxu0 %v250
    %309 = vmatprep.subr.bf16.mxu0 0
    %310 = vmatpush1.bf16.xpose.msra.mxu0 %v253
    %311 = vmatprep.mubr.bf16.mxu0 0
    %312 = vmatmul.mubr.bf16.gmra.mrb[0].mxu0 %v205
    %v313 = vpop.f32.mrb[0].mxu0
    %v314 = vadd.f32 %v71, %v313
    %v315 = vpop.f32.mrb[0].mxu0
    %v316 = vadd.f32 %v75, %v315
    %v317 = vpop.f32.mrb[0].mxu0
    %v318 = vpop.f32.mrb[0].mxu0
    %319 = vdwg.mxu0
    %320 = vmatprep.subr.bf16.mxu0 0
    %321 = vmatpush1.bf16.xpose.msra.mxu0 %v256
    %322 = vmatprep.subr.bf16.mxu0 0
    %323 = vmatpush1.bf16.xpose.msra.mxu0 %v259
    %324 = vmatprep.subr.bf16.mxu0 0
    %325 = vmatpush1.bf16.xpose.msra.mxu0 %v262
    %326 = vmatprep.subr.bf16.mxu0 0
    %327 = vmatpush1.bf16.xpose.msra.mxu0 %v265
    %328 = vmatprep.subr.bf16.mxu0 0
    %329 = vmatpush1.bf16.xpose.msra.mxu0 %v268
    %330 = vmatprep.subr.bf16.mxu0 0
    %331 = vmatpush1.bf16.xpose.msra.mxu0 %v271
    %332 = vmatprep.subr.bf16.mxu0 0
    %333 = vmatpush1.bf16.xpose.msra.mxu0 %v274
    %334 = vmatprep.subr.bf16.mxu0 0
    %335 = vmatpush1.bf16.xpose.msra.mxu0 %v277
    %336 = vmatprep.subr.bf16.mxu0 0
    %337 = vmatpush1.bf16.xpose.msra.mxu0 0
    %338 = vmatprep.subr.bf16.mxu0 0
    %339 = vmatpush1.bf16.xpose.msra.mxu0 0
    %340 = vmatprep.subr.bf16.mxu0 0
    %341 = vmatpush1.bf16.xpose.msra.mxu0 0
    %342 = vmatprep.subr.bf16.mxu0 0
    %343 = vmatpush1.bf16.xpose.msra.mxu0 0
    %344 = vmatprep.subr.bf16.mxu0 0
    %345 = vmatpush1.bf16.xpose.msra.mxu0 0
    %346 = vmatprep.subr.bf16.mxu0 0
    %347 = vmatpush1.bf16.xpose.msra.mxu0 0
    %348 = vmatprep.subr.bf16.mxu0 0
    %349 = vmatpush1.bf16.xpose.msra.mxu0 0
    %350 = vmatprep.subr.bf16.mxu0 0
    %351 = vmatpush1.bf16.xpose.msra.mxu0 0
    %352 = vmatprep.mubr.bf16.mxu0 0
    %353 = vmatmul.mubr.bf16.gmra.mrb[0].mxu0 %v205
    %v354 = vpop.f32.mrb[0].mxu0
    %v355 = vadd.f32 %v79, %v354
    %v356 = vpop.f32.mrb[0].mxu0
    %v357 = vpop.f32.mrb[0].mxu0
    %v358 = vpop.f32.mrb[0].mxu0
    %359 = vdwg.mxu0
    %v360 = vmul.f32 %v314, %v314
    %361 = vadd.xlane.f32.xlu0 %v360
    %v362 = vpop.xlane.xlu0 %361
    %v363 = vmax.f32 %v362, 1e-24
    %v364 = vrsqrt.pop %v363
    %v365 = vmul.f32 %v364, 3.1622777
    %v366 = vmul.f32 %v314, %v365
    %v367 = vmul.f32 %v316, %v316
    %368 = vadd.xlane.f32.xlu0 %v367
    %v369 = vpop.xlane.xlu0 %368
    %v370 = vmax.f32 %v369, 1e-24
    %v371 = vrsqrt.pop %v370
    %v372 = vmul.f32 %v371, 3.1622777
    %v373 = vmul.f32 %v316, %v372
    %v374 = vmul.f32 %v355, %v355
    %375 = vadd.xlane.f32.xlu0 %v374
    %v376 = vpop.xlane.xlu0 %375
    %v377 = vmax.f32 %v376, 1e-24
    %v378 = vrsqrt.pop %v377
    %v379 = vmul.f32 %v378, 3.1622777
    %v380 = vmul.f32 %v355, %v379
    %381 = vmatprep.subr.mxu0 0.0
    %382 = vmatpush1.xpose.msra.mxu0 %v373
    %383 = vmatprep.subr.mxu0 0.0
    %384 = vmatpush1.xpose.msra.mxu0 0.0
    %385 = vmatprep.subr.mxu0 0.0
    %386 = vmatpush1.xpose.msra.mxu0 0.0
    %387 = vmatprep.subr.mxu0 0.0
    %388 = vmatpush1.xpose.msra.mxu0 0.0
    %389 = vmatprep.subr.mxu0 0.0
    %390 = vmatpush1.xpose.msra.mxu0 0.0
    %391 = vmatprep.subr.mxu0 0.0
    %392 = vmatpush1.xpose.msra.mxu0 0.0
    %393 = vmatprep.subr.mxu0 0.0
    %394 = vmatpush1.xpose.msra.mxu0 0.0
    %395 = vmatprep.subr.mxu0 0.0
    %396 = vmatpush1.xpose.msra.mxu0 0.0
    %397 = vmatprep.subr.mxu0 0.0
    %398 = vmatpush1.xpose.msra.mxu0 0.0
    %399 = vmatprep.subr.mxu0 0.0
    %400 = vmatpush1.xpose.msra.mxu0 0.0
    %401 = vmatprep.subr.mxu0 0.0
    %402 = vmatpush1.xpose.msra.mxu0 0.0
    %403 = vmatprep.subr.mxu0 0.0
    %404 = vmatpush1.xpose.msra.mxu0 0.0
    %405 = vmatprep.subr.mxu0 0.0
    %406 = vmatpush1.xpose.msra.mxu0 0.0
    %407 = vmatprep.subr.mxu0 0.0
    %408 = vmatpush1.xpose.msra.mxu0 0.0
    %409 = vmatprep.subr.mxu0 0.0
    %410 = vmatpush1.xpose.msra.mxu0 0.0
    %411 = vmatprep.subr.mxu0 0.0
    %412 = vmatpush1.xpose.msra.mxu0 0.0
    %413 = vmatprep.subr.mxu0 0.0
    %414 = vmatpush1.xpose.msra.mxu0 0.0
    %415 = vmatprep.subr.mxu0 0.0
    %416 = vmatpush1.xpose.msra.mxu0 0.0
    %417 = vmatprep.subr.mxu0 0.0
    %418 = vmatpush1.xpose.msra.mxu0 0.0
    %419 = vmatprep.subr.mxu0 0.0
    %420 = vmatpush1.xpose.msra.mxu0 0.0
    %421 = vmatprep.subr.mxu0 0.0
    %422 = vmatpush1.xpose.msra.mxu0 0.0
    %423 = vmatprep.subr.mxu0 0.0
    %424 = vmatpush1.xpose.msra.mxu0 0.0
    %425 = vmatprep.subr.mxu0 0.0
    %426 = vmatpush1.xpose.msra.mxu0 0.0
    %427 = vmatprep.subr.mxu0 0.0
    %428 = vmatpush1.xpose.msra.mxu0 0.0
    %429 = vmatprep.subr.mxu0 0.0
    %430 = vmatpush1.xpose.msra.mxu0 0.0
    %431 = vmatprep.subr.mxu0 0.0
    %432 = vmatpush1.xpose.msra.mxu0 0.0
    %433 = vmatprep.subr.mxu0 0.0
    %434 = vmatpush1.xpose.msra.mxu0 0.0
    %435 = vmatprep.subr.mxu0 0.0
    %436 = vmatpush1.xpose.msra.mxu0 0.0
    %437 = vmatprep.subr.mxu0 0.0
    %438 = vmatpush1.xpose.msra.mxu0 0.0
    %439 = vmatprep.subr.mxu0 0.0
    %440 = vmatpush1.xpose.msra.mxu0 0.0
    %441 = vmatprep.subr.mxu0 0.0
    %442 = vmatpush1.xpose.msra.mxu0 0.0
    %443 = vmatprep.subr.mxu0 0.0
    %444 = vmatpush1.xpose.msra.mxu0 0.0
    %445 = vmatprep.mubr.f32.mxu0 0.0
    %446 = vmatmul.mubr.f32.gmra.mrb[0].mxu0 %v366
    %v447 = vpop.f32.mrb[0].mxu0
    %v448 = vadd.f32 0.0, %v447
    %v449 = vpop.f32.mrb[0].mxu0
    %450 = vdwg.mxu0
    %v451 = vmul.f32 %v366, %v373
    %452 = vadd.xlane.f32.xlu0 %v451
    %v453 = vpop.xlane.xlu0 %452
    %v454 = vrot.slane %v453, 4
    %v455 = vadd.f32 %v453, %v454
    %v456 = vrot.slane %v455, 2
    %v457 = vadd.f32 %v455, %v456
    %v458 = vrot.slane %v457, 1
    %v459 = vadd.f32 %v457, %v458
    %s460 = vtos %v459
    %vm461 = vcmask 64512
    %v462 = vsel %vm461, %v448, -inf
    %463 = vmax.xlane.f32.xlu0 %v462
    %v464 = vpop.xlane.xlu0 %463
    %v465 = vsub.f32 %v448, %v464
    %v466 = vmul.f32 %v465, 1.442695
    %v467 = vpow.pop %v466
    %v468 = vsel %vm461, %v467, 0.0
    %469 = vadd.xlane.f32.xlu0 %v468
    %v470 = vpop.xlane.xlu0 %469
    %v471 = vlog2.pop %v470
    %v472 = vmul.f32 %v471, 0.6931472
    %v473 = vadd.f32 %v464, %v472
    %v474 = vrot.slane %v462, 4
    %v475 = vmax.f32 %v462, %v474
    %v476 = vrot.slane %v475, 2
    %v477 = vmax.f32 %v475, %v476
    %v478 = vrot.slane %v477, 1
    %v479 = vmax.f32 %v477, %v478
    %v480 = vsub.f32 %v448, %v479
    %v481 = vmul.f32 %v480, 1.442695
    %v482 = vpow.pop %v481
    %v483 = vsel %vm461, %v482, 0.0
    %v484 = vrot.slane %v483, 4
    %v485 = vadd.f32 %v483, %v484
    %v486 = vrot.slane %v485, 2
    %v487 = vadd.f32 %v485, %v486
    %v488 = vrot.slane %v487, 1
    %v489 = vadd.f32 %v487, %v488
    %v490 = vlog2.pop %v489
    %v491 = vmul.f32 %v490, 0.6931472
    %v492 = vadd.f32 %v479, %v491
    %vm493 = vcmask 7168
    %v494 = vsel %vm493, %v473, 0.0
    %495 = vadd.xlane.f32.xlu0 %v494
    %v496 = vpop.xlane.xlu0 %495
    %v497 = vrot.slane %v496, 4
    %v498 = vadd.f32 %v496, %v497
    %v499 = vrot.slane %v498, 2
    %v500 = vadd.f32 %v498, %v499
    %v501 = vrot.slane %v500, 1
    %v502 = vadd.f32 %v500, %v501
    %s503 = vtos %v502
    %vm504 = vcmask 57344
    %v505 = vsel %vm504, %v492, 0.0
    %506 = vadd.xlane.f32.xlu0 %v505
    %v507 = vpop.xlane.xlu0 %506
    %v508 = vrot.slane %v507, 4
    %v509 = vadd.f32 %v507, %v508
    %v510 = vrot.slane %v509, 2
    %v511 = vadd.f32 %v509, %v510
    %v512 = vrot.slane %v511, 1
    %v513 = vadd.f32 %v511, %v512
    %s514 = vtos %v513
    %s515 = sadd.f32 %s503, %s514
    %s516 = smul.f32 %s460, 2.0
    %s517 = ssub.f32 %s515, %s516
    %s518 = smul.f32 %s517, 0.0625
    %519 = vmatprep.subr.mxu0 0.0
    %520 = vmatpush1.xpose.msra.mxu0 %v380
    %521 = vmatprep.subr.mxu0 0.0
    %522 = vmatpush1.xpose.msra.mxu0 0.0
    %523 = vmatprep.subr.mxu0 0.0
    %524 = vmatpush1.xpose.msra.mxu0 0.0
    %525 = vmatprep.subr.mxu0 0.0
    %526 = vmatpush1.xpose.msra.mxu0 0.0
    %527 = vmatprep.subr.mxu0 0.0
    %528 = vmatpush1.xpose.msra.mxu0 0.0
    %529 = vmatprep.subr.mxu0 0.0
    %530 = vmatpush1.xpose.msra.mxu0 0.0
    %531 = vmatprep.subr.mxu0 0.0
    %532 = vmatpush1.xpose.msra.mxu0 0.0
    %533 = vmatprep.subr.mxu0 0.0
    %534 = vmatpush1.xpose.msra.mxu0 0.0
    %535 = vmatprep.subr.mxu0 0.0
    %536 = vmatpush1.xpose.msra.mxu0 0.0
    %537 = vmatprep.subr.mxu0 0.0
    %538 = vmatpush1.xpose.msra.mxu0 0.0
    %539 = vmatprep.subr.mxu0 0.0
    %540 = vmatpush1.xpose.msra.mxu0 0.0
    %541 = vmatprep.subr.mxu0 0.0
    %542 = vmatpush1.xpose.msra.mxu0 0.0
    %543 = vmatprep.subr.mxu0 0.0
    %544 = vmatpush1.xpose.msra.mxu0 0.0
    %545 = vmatprep.subr.mxu0 0.0
    %546 = vmatpush1.xpose.msra.mxu0 0.0
    %547 = vmatprep.subr.mxu0 0.0
    %548 = vmatpush1.xpose.msra.mxu0 0.0
    %549 = vmatprep.subr.mxu0 0.0
    %550 = vmatpush1.xpose.msra.mxu0 0.0
    %551 = vmatprep.subr.mxu0 0.0
    %552 = vmatpush1.xpose.msra.mxu0 0.0
    %553 = vmatprep.subr.mxu0 0.0
    %554 = vmatpush1.xpose.msra.mxu0 0.0
    %555 = vmatprep.subr.mxu0 0.0
    %556 = vmatpush1.xpose.msra.mxu0 0.0
    %557 = vmatprep.subr.mxu0 0.0
    %558 = vmatpush1.xpose.msra.mxu0 0.0
    %559 = vmatprep.subr.mxu0 0.0
    %560 = vmatpush1.xpose.msra.mxu0 0.0
    %561 = vmatprep.subr.mxu0 0.0
    %562 = vmatpush1.xpose.msra.mxu0 0.0
    %563 = vmatprep.subr.mxu0 0.0
    %564 = vmatpush1.xpose.msra.mxu0 0.0
    %565 = vmatprep.subr.mxu0 0.0
    %566 = vmatpush1.xpose.msra.mxu0 0.0
    %567 = vmatprep.subr.mxu0 0.0
    %568 = vmatpush1.xpose.msra.mxu0 0.0
    %569 = vmatprep.subr.mxu0 0.0
    %570 = vmatpush1.xpose.msra.mxu0 0.0
    %571 = vmatprep.subr.mxu0 0.0
    %572 = vmatpush1.xpose.msra.mxu0 0.0
    %573 = vmatprep.subr.mxu0 0.0
    %574 = vmatpush1.xpose.msra.mxu0 0.0
    %575 = vmatprep.subr.mxu0 0.0
    %576 = vmatpush1.xpose.msra.mxu0 0.0
    %577 = vmatprep.subr.mxu0 0.0
    %578 = vmatpush1.xpose.msra.mxu0 0.0
    %579 = vmatprep.subr.mxu0 0.0
    %580 = vmatpush1.xpose.msra.mxu0 0.0
    %581 = vmatprep.subr.mxu0 0.0
    %582 = vmatpush1.xpose.msra.mxu0 0.0
    %583 = vmatprep.mubr.f32.mxu0 0.0
    %584 = vmatmul.mubr.f32.gmra.mrb[0].mxu0 %v366
    %v585 = vpop.f32.mrb[0].mxu0
    %v586 = vadd.f32 0.0, %v585
    %v587 = vpop.f32.mrb[0].mxu0
    %588 = vdwg.mxu0
    %v589 = vmul.f32 %v366, %v380
    %590 = vadd.xlane.f32.xlu0 %v589
    %v591 = vpop.xlane.xlu0 %590
    %v592 = vrot.slane %v591, 4
    %v593 = vadd.f32 %v591, %v592
    %v594 = vrot.slane %v593, 2
    %v595 = vadd.f32 %v593, %v594
    %v596 = vrot.slane %v595, 1
    %v597 = vadd.f32 %v595, %v596
    %s598 = vtos %v597
    %v599 = vsel %vm461, %v586, -inf
    %600 = vmax.xlane.f32.xlu0 %v599
    %v601 = vpop.xlane.xlu0 %600
    %v602 = vsub.f32 %v586, %v601
    %v603 = vmul.f32 %v602, 1.442695
    %v604 = vpow.pop %v603
    %v605 = vsel %vm461, %v604, 0.0
    %606 = vadd.xlane.f32.xlu0 %v605
    %v607 = vpop.xlane.xlu0 %606
    %v608 = vlog2.pop %v607
    %v609 = vmul.f32 %v608, 0.6931472
    %v610 = vadd.f32 %v601, %v609
    %v611 = vrot.slane %v599, 4
    %v612 = vmax.f32 %v599, %v611
    %v613 = vrot.slane %v612, 2
    %v614 = vmax.f32 %v612, %v613
    %v615 = vrot.slane %v614, 1
    %v616 = vmax.f32 %v614, %v615
    %v617 = vsub.f32 %v586, %v616
    %v618 = vmul.f32 %v617, 1.442695
    %v619 = vpow.pop %v618
    %v620 = vsel %vm461, %v619, 0.0
    %v621 = vrot.slane %v620, 4
    %v622 = vadd.f32 %v620, %v621
    %v623 = vrot.slane %v622, 2
    %v624 = vadd.f32 %v622, %v623
    %v625 = vrot.slane %v624, 1
    %v626 = vadd.f32 %v624, %v625
    %v627 = vlog2.pop %v626
    %v628 = vmul.f32 %v627, 0.6931472
    %v629 = vadd.f32 %v616, %v628
    %v630 = vsel %vm493, %v610, 0.0
    %631 = vadd.xlane.f32.xlu0 %v630
    %v632 = vpop.xlane.xlu0 %631
    %v633 = vrot.slane %v632, 4
    %v634 = vadd.f32 %v632, %v633
    %v635 = vrot.slane %v634, 2
    %v636 = vadd.f32 %v634, %v635
    %v637 = vrot.slane %v636, 1
    %v638 = vadd.f32 %v636, %v637
    %s639 = vtos %v638
    %v640 = vsel %vm504, %v629, 0.0
    %641 = vadd.xlane.f32.xlu0 %v640
    %v642 = vpop.xlane.xlu0 %641
    %v643 = vrot.slane %v642, 4
    %v644 = vadd.f32 %v642, %v643
    %v645 = vrot.slane %v644, 2
    %v646 = vadd.f32 %v644, %v645
    %v647 = vrot.slane %v646, 1
    %v648 = vadd.f32 %v646, %v647
    %s649 = vtos %v648
    %s650 = sadd.f32 %s639, %s649
    %s651 = smul.f32 %s598, 2.0
    %s652 = ssub.f32 %s650, %s651
    %s653 = smul.f32 %s652, 0.0625
    %s654 = sadd.f32 %s518, %s653
    %655 = vmatprep.subr.mxu0 0.0
    %656 = vmatpush1.xpose.msra.mxu0 %v380
    %657 = vmatprep.subr.mxu0 0.0
    %658 = vmatpush1.xpose.msra.mxu0 0.0
    %659 = vmatprep.subr.mxu0 0.0
    %660 = vmatpush1.xpose.msra.mxu0 0.0
    %661 = vmatprep.subr.mxu0 0.0
    %662 = vmatpush1.xpose.msra.mxu0 0.0
    %663 = vmatprep.subr.mxu0 0.0
    %664 = vmatpush1.xpose.msra.mxu0 0.0
    %665 = vmatprep.subr.mxu0 0.0
    %666 = vmatpush1.xpose.msra.mxu0 0.0
    %667 = vmatprep.subr.mxu0 0.0
    %668 = vmatpush1.xpose.msra.mxu0 0.0
    %669 = vmatprep.subr.mxu0 0.0
    %670 = vmatpush1.xpose.msra.mxu0 0.0
    %671 = vmatprep.subr.mxu0 0.0
    %672 = vmatpush1.xpose.msra.mxu0 0.0
    %673 = vmatprep.subr.mxu0 0.0
    %674 = vmatpush1.xpose.msra.mxu0 0.0
    %675 = vmatprep.subr.mxu0 0.0
    %676 = vmatpush1.xpose.msra.mxu0 0.0
    %677 = vmatprep.subr.mxu0 0.0
    %678 = vmatpush1.xpose.msra.mxu0 0.0
    %679 = vmatprep.subr.mxu0 0.0
    %680 = vmatpush1.xpose.msra.mxu0 0.0
    %681 = vmatprep.subr.mxu0 0.0
    %682 = vmatpush1.xpose.msra.mxu0 0.0
    %683 = vmatprep.subr.mxu0 0.0
    %684 = vmatpush1.xpose.msra.mxu0 0.0
    %685 = vmatprep.subr.mxu0 0.0
    %686 = vmatpush1.xpose.msra.mxu0 0.0
    %687 = vmatprep.subr.mxu0 0.0
    %688 = vmatpush1.xpose.msra.mxu0 0.0
    %689 = vmatprep.subr.mxu0 0.0
    %690 = vmatpush1.xpose.msra.mxu0 0.0
    %691 = vmatprep.subr.mxu0 0.0
    %692 = vmatpush1.xpose.msra.mxu0 0.0
    %693 = vmatprep.subr.mxu0 0.0
    %694 = vmatpush1.xpose.msra.mxu0 0.0
    %695 = vmatprep.subr.mxu0 0.0
    %696 = vmatpush1.xpose.msra.mxu0 0.0
    %697 = vmatprep.subr.mxu0 0.0
    %698 = vmatpush1.xpose.msra.mxu0 0.0
    %699 = vmatprep.subr.mxu0 0.0
    %700 = vmatpush1.xpose.msra.mxu0 0.0
    %701 = vmatprep.subr.mxu0 0.0
    %702 = vmatpush1.xpose.msra.mxu0 0.0
    %703 = vmatprep.subr.mxu0 0.0
    %704 = vmatpush1.xpose.msra.mxu0 0.0
    %705 = vmatprep.subr.mxu0 0.0
    %706 = vmatpush1.xpose.msra.mxu0 0.0
    %707 = vmatprep.subr.mxu0 0.0
    %708 = vmatpush1.xpose.msra.mxu0 0.0
    %709 = vmatprep.subr.mxu0 0.0
    %710 = vmatpush1.xpose.msra.mxu0 0.0
    %711 = vmatprep.subr.mxu0 0.0
    %712 = vmatpush1.xpose.msra.mxu0 0.0
    %713 = vmatprep.subr.mxu0 0.0
    %714 = vmatpush1.xpose.msra.mxu0 0.0
    %715 = vmatprep.subr.mxu0 0.0
    %716 = vmatpush1.xpose.msra.mxu0 0.0
    %717 = vmatprep.subr.mxu0 0.0
    %718 = vmatpush1.xpose.msra.mxu0 0.0
    %719 = vmatprep.mubr.f32.mxu0 0.0
    %720 = vmatmul.mubr.f32.gmra.mrb[0].mxu0 %v373
    %v721 = vpop.f32.mrb[0].mxu0
    %v722 = vadd.f32 0.0, %v721
    %v723 = vpop.f32.mrb[0].mxu0
    %724 = vdwg.mxu0
    %v725 = vmul.f32 %v373, %v380
    %726 = vadd.xlane.f32.xlu0 %v725
    %v727 = vpop.xlane.xlu0 %726
    %v728 = vrot.slane %v727, 4
    %v729 = vadd.f32 %v727, %v728
    %v730 = vrot.slane %v729, 2
    %v731 = vadd.f32 %v729, %v730
    %v732 = vrot.slane %v731, 1
    %v733 = vadd.f32 %v731, %v732
    %s734 = vtos %v733
    %v735 = vsel %vm461, %v722, -inf
    %736 = vmax.xlane.f32.xlu0 %v735
    %v737 = vpop.xlane.xlu0 %736
    %v738 = vsub.f32 %v722, %v737
    %v739 = vmul.f32 %v738, 1.442695
    %v740 = vpow.pop %v739
    %v741 = vsel %vm461, %v740, 0.0
    %742 = vadd.xlane.f32.xlu0 %v741
    %v743 = vpop.xlane.xlu0 %742
    %v744 = vlog2.pop %v743
    %v745 = vmul.f32 %v744, 0.6931472
    %v746 = vadd.f32 %v737, %v745
    %v747 = vrot.slane %v735, 4
    %v748 = vmax.f32 %v735, %v747
    %v749 = vrot.slane %v748, 2
    %v750 = vmax.f32 %v748, %v749
    %v751 = vrot.slane %v750, 1
    %v752 = vmax.f32 %v750, %v751
    %v753 = vsub.f32 %v722, %v752
    %v754 = vmul.f32 %v753, 1.442695
    %v755 = vpow.pop %v754
    %v756 = vsel %vm461, %v755, 0.0
    %v757 = vrot.slane %v756, 4
    %v758 = vadd.f32 %v756, %v757
    %v759 = vrot.slane %v758, 2
    %v760 = vadd.f32 %v758, %v759
    %v761 = vrot.slane %v760, 1
    %v762 = vadd.f32 %v760, %v761
    %v763 = vlog2.pop %v762
    %v764 = vmul.f32 %v763, 0.6931472
    %v765 = vadd.f32 %v752, %v764
    %v766 = vsel %vm493, %v746, 0.0
    %767 = vadd.xlane.f32.xlu0 %v766
    %v768 = vpop.xlane.xlu0 %767
    %v769 = vrot.slane %v768, 4
    %v770 = vadd.f32 %v768, %v769
    %v771 = vrot.slane %v770, 2
    %v772 = vadd.f32 %v770, %v771
    %v773 = vrot.slane %v772, 1
    %v774 = vadd.f32 %v772, %v773
    %s775 = vtos %v774
    %v776 = vsel %vm504, %v765, 0.0
    %777 = vadd.xlane.f32.xlu0 %v776
    %v778 = vpop.xlane.xlu0 %777
    %v779 = vrot.slane %v778, 4
    %v780 = vadd.f32 %v778, %v779
    %v781 = vrot.slane %v780, 2
    %v782 = vadd.f32 %v780, %v781
    %v783 = vrot.slane %v782, 1
    %v784 = vadd.f32 %v782, %v783
    %s785 = vtos %v784
    %s786 = sadd.f32 %s775, %s785
    %s787 = smul.f32 %s734, 2.0
    %s788 = ssub.f32 %s786, %s787
    %s789 = smul.f32 %s788, 0.0625
    %s790 = sadd.f32 %s654, %s789
    %s791 = scalar_lea.smem [#allocation2], 0
    %792 = sst [smem:[%s791]] %s790
    // Predicated region
    $region14: #{tpu_custom_call.1} parent=1 // pred_check
      _
    $region15: #{tpu_custom_call.1} parent=1 // pred_check_branch
      %794 = sbr.rel (0) target = $region17
    $region16: #{tpu_custom_call.1} parent=1 // pred_region
      %s796 = ssub.s32 16, 16
      %797 = vsyncadd [#allocation3], %s796
      %800 = dma.smem_to_hbm [#allocation2], 16, %s3, [#allocation3]
    $region17: #{tpu_custom_call.1} parent=1 // pred_fallthru
      _
    // Predicated region
    $region18: #{tpu_custom_call.1} parent=1 // pred_check
      _
    $region19: #{tpu_custom_call.1} parent=1 // pred_check_branch
      %802 = sbr.rel (0) target = $region21
    $region20: #{tpu_custom_call.1} parent=1 // pred_region
      %803 = dma.done [#allocation3], 16
    $region21: #{tpu_custom_call.1} parent=1 // pred_fallthru
      _
    %804 = sfence
    %805 = vsyncpa [#allocation3], 1

</llo_original>
